<compile_context>
chip_gen: v7x
topology: tpu7x:2x2x1
jax: 0.10.0
libtpu: 0.0.40
codegen_flags: <defaults>
</compile_context>

<pallas_src>
import functools
import math

import jax
import jax.numpy as jnp
from jax.experimental import pallas as pl
from jax.experimental.pallas import tpu as pltpu


# ---------------------------------------------------------------------------
# Linear kernel:  y = x @ W + b, tiled over rows.
# ---------------------------------------------------------------------------
def _linear_kernel(x_ref, w_ref, b_ref, o_ref):
    # x_ref: (tm, K)   w_ref: (K, N)   b_ref: (1, N)   o_ref: (tm, N)
    y = jnp.dot(x_ref[...], w_ref[...], preferred_element_type=jnp.float32)
    y = y + b_ref[...].astype(jnp.float32)          # broadcast (1, N)
    o_ref[...] = y.astype(o_ref.dtype)


def _round_up(n, m):
    return ((n + m - 1) // m) * m


def _linear(x2d, w, b, *, tm=256):
    """x2d: [M, K]; w: [K, N]; b: [N]  ->  [M, N]."""
    M, K = x2d.shape
    N = w.shape[1]

    # Big row tile for MXU occupancy, but never bigger than the (8-aligned)
    # problem; pad rows to a tile multiple and slice the padding off after.
    tm_eff = min(tm, _round_up(M, 8))
    Mp = _round_up(M, tm_eff)
    if Mp != M:
        x2d = jnp.pad(x2d, ((0, Mp - M), (0, 0)))

    out = pl.pallas_call(
        _linear_kernel,
        out_shape=jax.ShapeDtypeStruct((Mp, N), x2d.dtype),
        grid_spec=pltpu.PrefetchScalarGridSpec(
            num_scalar_prefetch=0,
            grid=(Mp // tm_eff,),
            in_specs=[
                pl.BlockSpec((tm_eff, K), lambda i: (i, 0)),   # x row tile
                pl.BlockSpec((K, N), lambda i: (0, 0)),        # W (resident)
                pl.BlockSpec((1, N), lambda i: (0, 0)),        # b (resident)
            ],
            out_specs=pl.BlockSpec((tm_eff, N), lambda i: (i, 0)),
        ),
        compiler_params=pltpu.CompilerParams(
            dimension_semantics=("parallel",)),
    )(x2d, w, b.reshape(1, N))

    return out[:M] if Mp != M else out


# ---------------------------------------------------------------------------
# Scaled dot-product attention kernel: one batch element (all heads) per step.
# ---------------------------------------------------------------------------
def _attention_kernel(q_ref, k_ref, v_ref, o_ref, *, scale):
    # q/k/v blocks: (H, S, dk)
    q = q_ref[...]
    k = k_ref[...]
    v = v_ref[...]

    s = jnp.einsum('hqd,hkd->hqk', q, k,
                   preferred_element_type=jnp.float32) * scale

    # Numerically stable softmax in f32.
    m = jnp.max(s, axis=-1, keepdims=True)
    p = jnp.exp(s - m)
    denom = jnp.sum(p, axis=-1, keepdims=True)
    probs = (p / denom).astype(v.dtype)

    out = jnp.einsum('hqk,hkd->hqd', probs, v,
                     preferred_element_type=jnp.float32)
    o_ref[...] = out.astype(o_ref.dtype)


def _attention(q_heads, k_heads, v_heads, *, num_heads, scale):
    """q/k/v_heads: [B*H, S, dk] -> [B*H, S, dk]."""
    BH, S, dk = q_heads.shape
    H = num_heads
    B = BH // H

    return pl.pallas_call(
        functools.partial(_attention_kernel, scale=scale),
        out_shape=jax.ShapeDtypeStruct((BH, S, dk), q_heads.dtype),
        grid_spec=pltpu.PrefetchScalarGridSpec(
            num_scalar_prefetch=0,
            grid=(B,),
            in_specs=[
                pl.BlockSpec((H, S, dk), lambda b: (b, 0, 0)),
                pl.BlockSpec((H, S, dk), lambda b: (b, 0, 0)),
                pl.BlockSpec((H, S, dk), lambda b: (b, 0, 0)),
            ],
            out_specs=pl.BlockSpec((H, S, dk), lambda b: (b, 0, 0)),
        ),
        compiler_params=pltpu.CompilerParams(
            dimension_semantics=("parallel",)),
    )(q_heads, k_heads, v_heads)


# ---------------------------------------------------------------------------
# Full MultiHeadAttention forward.
# ---------------------------------------------------------------------------
def multi_head_attention(q, k, v, params, *, num_heads, tm=256):
    """q/k/v: [B, S, d_model]; params: (wq, bq, wk, bk, wv, bv, wo, bo),
    each weight stored as [in_features, out_features]."""
    wq, bq, wk, bk, wv, bv, wo, bo = params
    B, S, D = q.shape
    H = num_heads
    assert D % H == 0, "d_model must be divisible by num_heads"
    dk = D // H
    M = B * S
    scale = 1.0 / math.sqrt(dk)

    def split_heads(x2d):
        # [M, D] -> [B*H, S, dk]
        return (x2d.reshape(B, S, H, dk)
                    .transpose(0, 2, 1, 3)
                    .reshape(B * H, S, dk))

    q_h = split_heads(_linear(q.reshape(M, D), wq, bq, tm=tm))
    k_h = split_heads(_linear(k.reshape(M, D), wk, bk, tm=tm))
    v_h = split_heads(_linear(v.reshape(M, D), wv, bv, tm=tm))

    attn = _attention(q_h, k_h, v_h, num_heads=H, scale=scale)

    # combine_heads: [B*H, S, dk] -> [M, D]
    combined = (attn.reshape(B, H, S, dk)
                    .transpose(0, 2, 1, 3)
                    .reshape(M, D))

    out = _linear(combined, wo, bo, tm=tm)
    return out.reshape(B, S, D)


# ---------------------------------------------------------------------------
# Pure-JAX reference of the same forward pass (for correctness check).
# ---------------------------------------------------------------------------
def _ref_mha(q, k, v, params, *, num_heads):
    wq, bq, wk, bk, wv, bv, wo, bo = params
    B, S, D = q.shape
    H = num_heads
    dk = D // H

    def split(x):
        return x.reshape(B, S, H, dk).transpose(0, 2, 1, 3)

    Q = split(q @ wq + bq)
    K = split(k @ wk + bk)
    V = split(v @ wv + bv)
    s = jnp.einsum('bhqd,bhkd->bhqk', Q, K) / math.sqrt(dk)
    p = jax.nn.softmax(s, axis=-1)
    o = jnp.einsum('bhqk,bhkd->bhqd', p, V)
    o = o.transpose(0, 2, 1, 3).reshape(B, S, D)
    return o @ wo + bo


if __name__ == "__main__":
    key = jax.random.PRNGKey(0)
    batch, seq, d_model, num_heads = 2, 8, 32, 4

    keys = jax.random.split(key, 11)
    q = jax.random.normal(keys[0], (batch, seq, d_model), jnp.float32)
    k = jax.random.normal(keys[1], (batch, seq, d_model), jnp.float32)
    v = jax.random.normal(keys[2], (batch, seq, d_model), jnp.float32)

    # Synthetic init mimicking nn.Linear's uniform ranges; weights stored
    # already transposed to [in, out] for the kernel.
    bound = 1.0 / math.sqrt(d_model)

    def make_linear(kw, kb):
        w = jax.random.uniform(kw, (d_model, d_model), jnp.float32, -bound, bound)
        b = jax.random.uniform(kb, (d_model,), jnp.float32, -bound, bound)
        return w, b

    wq, bq = make_linear(keys[3], keys[4])
    wk, bk = make_linear(keys[5], keys[6])
    wv, bv = make_linear(keys[7], keys[8])
    wo, bo = make_linear(keys[9], keys[10])
    params = (wq, bq, wk, bk, wv, bv, wo, bo)

    out = multi_head_attention(q, k, v, params, num_heads=num_heads)
    out = jax.block_until_ready(out)

    ref = _ref_mha(q, k, v, params, num_heads=num_heads)
    assert out.shape == (batch, seq, d_model)
    assert jnp.allclose(out, ref, atol=1e-4, rtol=1e-4), \
        float(jnp.max(jnp.abs(out - ref)))

    print("KERNEL_OK")
</pallas_src>

<mosaic_0001>
module attributes {stable_mosaic.version = 11 : i64} {
  func.func @_linear_kernel(%arg0: i32, %arg1: memref<16x32xf32, #tpu.memory_space<vmem>>, %arg2: memref<32x32xf32, #tpu.memory_space<vmem>>, %arg3: memref<1x32xf32, #tpu.memory_space<vmem>>, %arg4: memref<16x32xf32, #tpu.memory_space<vmem>>) attributes {dimension_semantics = [#tpu.dimension_semantics<parallel>], iteration_bounds = array<i64: 1>, scalar_prefetch = 0 : i64, scratch_operands = 0 : i64, tpu.core_type = #tpu.core_type<tc>, window_params = [{transform_indices = @transform_0, window_bounds = array<i64: 16, 32>}, {pipeline_mode = #tpu.pipeline_mode<synchronous>, transform_indices = @transform_1, window_bounds = array<i64: 32, 32>}, {pipeline_mode = #tpu.pipeline_mode<synchronous>, transform_indices = @transform_2, window_bounds = array<i64: 1, 32>}, {transform_indices = @transform_3, window_bounds = array<i64: 16, 32>}]} {
    %c0 = arith.constant 0 : index
    %c0_0 = arith.constant 0 : index
    %0 = vector.load %arg1[%c0, %c0_0] : memref<16x32xf32, #tpu.memory_space<vmem>>, vector<16x32xf32>
    %c0_1 = arith.constant 0 : index
    %c0_2 = arith.constant 0 : index
    %1 = vector.load %arg2[%c0_1, %c0_2] : memref<32x32xf32, #tpu.memory_space<vmem>>, vector<32x32xf32>
    %cst = arith.constant dense<0.000000e+00> : vector<16x32xf32>
    %2 = tpu.matmul %0, %1, %cst {dimension_numbers = #tpu.dot_dimension_numbers<[1], [0], [0], [1], [0, 0, 1, 1], [], []>} : vector<16x32xf32>, vector<32x32xf32>, vector<16x32xf32> -> vector<16x32xf32>
    %c0_3 = arith.constant 0 : index
    %c0_4 = arith.constant 0 : index
    %3 = vector.load %arg3[%c0_3, %c0_4] : memref<1x32xf32, #tpu.memory_space<vmem>>, vector<1x32xf32>
    %4 = vector.broadcast %3 : vector<1x32xf32> to vector<16x32xf32>
    %5 = arith.addf %2, %4 : vector<16x32xf32>
    %c0_5 = arith.constant 0 : index
    %c0_6 = arith.constant 0 : index
    %6 = vector.load %arg4[%c0_5, %c0_6] : memref<16x32xf32, #tpu.memory_space<vmem>>, vector<16x32xf32>
    tpu.vector_store %arg4[%c0_5, %c0_6], %5 {strides = array<i32>} : memref<16x32xf32, #tpu.memory_space<vmem>>, vector<16x32xf32>,
    return
  }
  func.func @transform_0(%arg0: i32) -> (i32, i32) {
    %c0_i32 = arith.constant 0 : i32
    %c0_i32_0 = arith.constant 0 : i32
    return %arg0, %c0_i32 : i32, i32
  }
  func.func @transform_1(%arg0: i32) -> (i32, i32) {
    %c0_i32 = arith.constant 0 : i32
    %c0_i32_0 = arith.constant 0 : i32
    %c0_i32_1 = arith.constant 0 : i32
    return %c0_i32, %c0_i32_0 : i32, i32
  }
  func.func @transform_2(%arg0: i32) -> (i32, i32) {
    %c0_i32 = arith.constant 0 : i32
    %c0_i32_0 = arith.constant 0 : i32
    %c0_i32_1 = arith.constant 0 : i32
    return %c0_i32, %c0_i32_0 : i32, i32
  }
  func.func @transform_3(%arg0: i32) -> (i32, i32) {
    %c0_i32 = arith.constant 0 : i32
    %c0_i32_0 = arith.constant 0 : i32
    return %arg0, %c0_i32 : i32, i32
  }
}

</mosaic_0001>

<llo_original>
// kernel: tpu_custom_call.1
$region0: #{tpu_custom_call.1}
  #allocation0 [shape = 'u32[]', space=smem, size = 0x4, offset = 0x4, fixed_abs, tag = 'smem constant byte address 0x4 - core index']
  #allocation1 [shape = 'u32[144,128]{1,0:T(1,128)}', space=vmem, size = 0x12000, scoped, tag = 'internal scratch']
  %s0 = inlined_call_operand.hbm [shape: f32[16,32], index: 0, kind: input, shape index: {}]
  %s1 = inlined_call_operand.hbm [shape: f32[32,32], index: 1, kind: input, shape index: {}]
  %s2 = inlined_call_operand.vmem [shape: f32[1,32], index: 2, kind: input, shape index: {}]
  %s3 = inlined_call_operand.hbm [shape: f32[16,32], index: 3, kind: output, shape index: {}]
  %s4 = sld [smem:[#allocation0]]
  $region30: #{tpu_custom_call.1} parent=0
    _
  %s6 = ssub.s32 1, %s4
  %s7 = scalar_select 0, %s6, %s4
  $region1: #{tpu_custom_call.1} parent=0
    #allocation2 [shape = 'u8[8192]{0}', space=vmem, size = 0x2000, scoped, tag = 'input window, operand 0, single buffered']
    #allocation3 [shape = 's32[1]{0}', space=sflag, size = 0x4, scoped, tag = 'scoped memory for tpu_custom_call.1']
    #allocation4 [shape = 's32[1]{0}', space=sflag, size = 0x4, scoped, tag = 'scoped memory for tpu_custom_call.1']
    #allocation5 [shape = 'u8[16384]{0}', space=vmem, size = 0x4000, scoped, tag = 'input window, operand 1, single buffered']
    #allocation6 [shape = 's32[1]{0}', space=sflag, size = 0x4, scoped, tag = 'scoped memory for tpu_custom_call.1']
    #allocation7 [shape = 'u8[8192]{0}', space=vmem, size = 0x2000, scoped, tag = 'output window, operand 0, single buffered']
    %8 = vsyncpa [#allocation3], 0
    %9 = vsyncpa [#allocation6], 0
    %10 = vsyncpa [#allocation4], 0
    // Predicated region
    $region2: #{tpu_custom_call.1} parent=1 // pred_check
      _
    $region3: #{tpu_custom_call.1} parent=1 // pred_check_branch
      %12 = sbr.rel (0) target = $region5
    $region4: #{tpu_custom_call.1} parent=1 // pred_region
      %s14 = ssub.s32 256, 256
      %15 = vsyncadd [#allocation3], %s14
      %s16 = sshll.u32 [#allocation2], 4
      %s17 = int_to_ptr.vmem [resolvable:$true] %s16
      %22 = dma.hbm_to_vmem [thread:$0]  %s0, 256, %s17, [#allocation3], 128, 128, 8
    $region5: #{tpu_custom_call.1} parent=1 // pred_fallthru
      _
    // Predicated region
    $region6: #{tpu_custom_call.1} parent=1 // pred_check
      _
    $region7: #{tpu_custom_call.1} parent=1 // pred_check_branch
      %24 = sbr.rel (0) target = $region9
    $region8: #{tpu_custom_call.1} parent=1 // pred_region
      %s26 = ssub.s32 512, 512
      %27 = vsyncadd [#allocation6], %s26
      %s28 = sshll.u32 [#allocation5], 4
      %s29 = int_to_ptr.vmem [resolvable:$true] %s28
      %34 = dma.hbm_to_vmem [thread:$0]  %s1, 512, %s29, [#allocation6], 128, 128, 8
    $region9: #{tpu_custom_call.1} parent=1 // pred_fallthru
      _
    // Predicated region
    $region10: #{tpu_custom_call.1} parent=1 // pred_check
      _
    $region11: #{tpu_custom_call.1} parent=1 // pred_check_branch
      %36 = sbr.rel (0) target = $region13
    $region12: #{tpu_custom_call.1} parent=1 // pred_region
      _
    $region13: #{tpu_custom_call.1} parent=1 // pred_fallthru
      _
    // Predicated region
    $region14: #{tpu_custom_call.1} parent=1 // pred_check
      _
    $region15: #{tpu_custom_call.1} parent=1 // pred_check_branch
      %38 = sbr.rel (0) target = $region17
    $region16: #{tpu_custom_call.1} parent=1 // pred_region
      %39 = dma.done [#allocation3], 256
    $region17: #{tpu_custom_call.1} parent=1 // pred_fallthru
      _
    // Predicated region
    $region18: #{tpu_custom_call.1} parent=1 // pred_check
      _
    $region19: #{tpu_custom_call.1} parent=1 // pred_check_branch
      %41 = sbr.rel (0) target = $region21
    $region20: #{tpu_custom_call.1} parent=1 // pred_region
      %42 = dma.done [#allocation6], 512
    $region21: #{tpu_custom_call.1} parent=1 // pred_fallthru
      _
    %v43 = vld [vmem:[#allocation2] sm:$0xff]
    %v44 = vld [vmem:[#allocation2 + $0x8] sm:$0xff]
    %v45 = vld [vmem:[#allocation5] sm:$0xff]
    %v46 = vld [vmem:[#allocation5 + $0x8] sm:$0xff]
    %v47 = vld [vmem:[#allocation5 + $0x10] sm:$0xff]
    %v48 = vld [vmem:[#allocation5 + $0x18] sm:$0xff]
    %v49 = vld [vmem:[%s2] sm:$0x1]
    %v51 = vlaneseq
    %v52 = vshrl.u32 %v51, 7
    %v53 = vsub.s32 0, %v52
    %v54 = vrot.slane %v49, %v53
    %vm56 = vcmask 261120
    %v58 = vsel %vm56, %v43, 0
    %v61 = vsel %vm56, %v44, 0
    %63 = vmatprep.subr.mxu0 0.0
    %64 = vmatpush1.msra.mxu0 %v45
    %65 = vmatprep.subr.mxu0 0.0
    %66 = vmatpush1.msra.mxu0 %v46
    %67 = vmatprep.subr.mxu0 0.0
    %68 = vmatpush1.msra.mxu0 %v47
    %69 = vmatprep.subr.mxu0 0.0
    %70 = vmatpush1.msra.mxu0 %v48
    %71 = vmatprep.subr.mxu0 0.0
    %72 = vmatpush1.msra.mxu0 0.0
    %73 = vmatprep.subr.mxu0 0.0
    %74 = vmatpush1.msra.mxu0 0.0
    %75 = vmatprep.subr.mxu0 0.0
    %76 = vmatpush1.msra.mxu0 0.0
    %77 = vmatprep.subr.mxu0 0.0
    %78 = vmatpush1.msra.mxu0 0.0
    %79 = vmatprep.subr.mxu0 0.0
    %80 = vmatpush1.msra.mxu0 0.0
    %81 = vmatprep.subr.mxu0 0.0
    %82 = vmatpush1.msra.mxu0 0.0
    %83 = vmatprep.subr.mxu0 0.0
    %84 = vmatpush1.msra.mxu0 0.0
    %85 = vmatprep.subr.mxu0 0.0
    %86 = vmatpush1.msra.mxu0 0.0
    %87 = vmatprep.subr.mxu0 0.0
    %88 = vmatpush1.msra.mxu0 0.0
    %89 = vmatprep.subr.mxu0 0.0
    %90 = vmatpush1.msra.mxu0 0.0
    %91 = vmatprep.subr.mxu0 0.0
    %92 = vmatpush1.msra.mxu0 0.0
    %93 = vmatprep.subr.mxu0 0.0
    %94 = vmatpush1.msra.mxu0 0.0
    %95 = vmatprep.subr.mxu0 0.0
    %96 = vmatpush1.msra.mxu0 0.0
    %97 = vmatprep.subr.mxu0 0.0
    %98 = vmatpush1.msra.mxu0 0.0
    %99 = vmatprep.subr.mxu0 0.0
    %100 = vmatpush1.msra.mxu0 0.0
    %101 = vmatprep.subr.mxu0 0.0
    %102 = vmatpush1.msra.mxu0 0.0
    %103 = vmatprep.subr.mxu0 0.0
    %104 = vmatpush1.msra.mxu0 0.0
    %105 = vmatprep.subr.mxu0 0.0
    %106 = vmatpush1.msra.mxu0 0.0
    %107 = vmatprep.subr.mxu0 0.0
    %108 = vmatpush1.msra.mxu0 0.0
    %109 = vmatprep.subr.mxu0 0.0
    %110 = vmatpush1.msra.mxu0 0.0
    %111 = vmatprep.subr.mxu0 0.0
    %112 = vmatpush1.msra.mxu0 0.0
    %113 = vmatprep.subr.mxu0 0.0
    %114 = vmatpush1.msra.mxu0 0.0
    %115 = vmatprep.subr.mxu0 0.0
    %116 = vmatpush1.msra.mxu0 0.0
    %117 = vmatprep.subr.mxu0 0.0
    %118 = vmatpush1.msra.mxu0 0.0
    %119 = vmatprep.subr.mxu0 0.0
    %120 = vmatpush1.msra.mxu0 0.0
    %121 = vmatprep.subr.mxu0 0.0
    %122 = vmatpush1.msra.mxu0 0.0
    %123 = vmatprep.subr.mxu0 0.0
    %124 = vmatpush1.msra.mxu0 0.0
    %125 = vmatprep.subr.mxu0 0.0
    %126 = vmatpush1.msra.mxu0 0.0
    %127 = vmatprep.mubr.f32.mxu0 0.0
    %128 = vmatmul.mubr.f32.gmra.mrb[0].mxu0 %v58
    %v129 = vpop.f32.mrb[0].mxu0
    %v130 = vadd.f32 %v54, %v129
    %v131 = vpop.f32.mrb[0].mxu0
    %132 = vmatprep.mubr.f32.mxu0 0.0
    %133 = vmatmul.mubr.f32.gmra.mrb[0].mxu0 %v61
    %v134 = vpop.f32.mrb[0].mxu0
    %v135 = vadd.f32 %v54, %v134
    %v136 = vpop.f32.mrb[0].mxu0
    %137 = vdwg.mxu0
    %138 = vst.msk [vmem:[#allocation7] sm:$0xff] %vm56, %v130
    %139 = vst.msk [vmem:[#allocation7 + $0x8] sm:$0xff] %vm56, %v135
    // Predicated region
    $region22: #{tpu_custom_call.1} parent=1 // pred_check
      _
    $region23: #{tpu_custom_call.1} parent=1 // pred_check_branch
      %141 = sbr.rel (0) target = $region25
    $region24: #{tpu_custom_call.1} parent=1 // pred_region
      %s143 = ssub.s32 256, 256
      %144 = vsyncadd [#allocation4], %s143
      %s145 = sshll.u32 [#allocation7], 4
      %s146 = int_to_ptr.vmem [resolvable:$true] %s145
      %151 = dma.vmem_to_hbm [thread:$0]  %s146, 256, %s3, [#allocation4], 128, 128, 8
    $region25: #{tpu_custom_call.1} parent=1 // pred_fallthru
      _
    // Predicated region
    $region26: #{tpu_custom_call.1} parent=1 // pred_check
      _
    $region27: #{tpu_custom_call.1} parent=1 // pred_check_branch
      %153 = sbr.rel (0) target = $region29
    $region28: #{tpu_custom_call.1} parent=1 // pred_region
      %154 = dma.done [#allocation4], 256
    $region29: #{tpu_custom_call.1} parent=1 // pred_fallthru
      _
    %155 = vsyncpa [#allocation3], 1
    %156 = vsyncpa [#allocation6], 1
    %157 = vsyncpa [#allocation4], 1

</llo_original>
